<compile_context>
chip_gen: v7x
topology: tpu7x:2x2x1
jax: 0.10.0
libtpu: 0.0.40
codegen_flags: <defaults>
</compile_context>

<pallas_src>
import jax
import jax.numpy as jnp
from jax.experimental import pallas as pl
from jax.experimental.pallas import tpu as pltpu

RESOLUTION = 50
LAYER_DIMS = [(1, 20), (20, 40), (40, 20), (20, 1)]  # fc1..fc4 (in, out)


def _round_up(n, m):
    return ((n + m - 1) // m) * m


def _dend_fcnet_kernel(x_ref,
                       w1_ref, b1_ref,
                       w2_ref, b2_ref,
                       w3_ref, b3_ref,
                       w4_ref, b4_ref,
                       out_ref):
    # Lane-dense layout: batch on the 128-lane axis, features on sublanes.
    x = x_ref[...]                                                   # (1, BT)

    # fc1: in_features == 1 -> rank-1 broadcast multiply on the VPU.
    h1 = jax.nn.sigmoid(w1_ref[...] * x + b1_ref[...])               # (20, BT)

    # fc2 / fc3: small MXU matmuls, W^T @ h keeps batch on the lane axis.
    h2 = jax.nn.sigmoid(
        jnp.dot(w2_ref[...], h1, preferred_element_type=jnp.float32)
        + b2_ref[...])                                               # (40, BT)
    h3 = jax.nn.sigmoid(
        jnp.dot(w3_ref[...], h2, preferred_element_type=jnp.float32)
        + b3_ref[...])                                               # (20, BT)

    # fc4: out_features == 1 -> VPU multiply + sublane reduce (avoid M=1 MXU op).
    out_ref[...] = (jnp.sum(w4_ref[...] * h3, axis=0, keepdims=True)
                    + b4_ref[...])                                   # (1, BT)


def prepare_params(params):
    """Collapse the resolution axis and transpose once at parameter-load time.

    Input  : [w1,b1,...,w4,b4] with w* of shape (in, resolution, out), b* of (1, out).
    Output : weights as (out, in) [except fc4 kept as an (in, 1) column],
             biases as (out, 1) columns -- everything the kernel needs, ~15 KB total.
    """
    w1, b1, w2, b2, w3, b3, w4, b4 = params
    w1_t = jnp.sum(w1, axis=1).T          # (20, 1)
    w2_t = jnp.sum(w2, axis=1).T          # (40, 20)
    w3_t = jnp.sum(w3, axis=1).T          # (20, 40)
    w4_c = jnp.sum(w4, axis=1)            # (20, 1)  column for the VPU weighted sum
    b1_c = b1.T                           # (20, 1)
    b2_c = b2.T                           # (40, 1)
    b3_c = b3.T                           # (20, 1)
    b4_c = b4.T                           # (1, 1)
    return (w1_t, b1_c, w2_t, b2_c, w3_t, b3_c, w4_c, b4_c)


def dend_fcnet_forward(x, prepared_params, block_b=8192):
    """x: (B, 1) or (B,) float32 -> (B, 1) float32 (matches PyTorch .reshape(-1, 1)).

    block_b: batch-tile width along the lane axis.  The default (8192 lanes) keeps
    per-step f32 intermediates (~328 B/column ≈ 2.7 MB/tile) comfortably inside
    v7x's 64 MiB VMEM with double-buffered x/out blocks.
    """
    w1_t, b1_c, w2_t, b2_c, w3_t, b3_c, w4_c, b4_c = prepared_params

    x = jnp.asarray(x, jnp.float32).reshape(-1)
    B = x.shape[0]

    bt = min(block_b, _round_up(B, 128))          # lane-dense tile, multiple of 128
    Bp = _round_up(B, bt)
    x_t = jnp.pad(x, (0, Bp - B)).reshape(1, Bp)  # (1, Bp) lane-dense input

    grid = (Bp // bt,)

    def resident(shape):
        # Full-array block with a constant index_map -> stays resident in VMEM.
        return pl.BlockSpec(shape, lambda i: (0, 0))

    out = pl.pallas_call(
        _dend_fcnet_kernel,
        out_shape=jax.ShapeDtypeStruct((1, Bp), jnp.float32),
        grid=grid,
        in_specs=[
            pl.BlockSpec((1, bt), lambda i: (0, i)),   # x tile
            resident((20, 1)),  resident((20, 1)),     # w1^T, b1
            resident((40, 20)), resident((40, 1)),     # w2^T, b2
            resident((20, 40)), resident((20, 1)),     # w3^T, b3
            resident((20, 1)),  resident((1, 1)),      # w4 column, b4
        ],
        out_specs=pl.BlockSpec((1, bt), lambda i: (0, i)),
        compiler_params=pltpu.CompilerParams(
            dimension_semantics=("parallel",)),        # shard batch tiles across TCs
    )(x_t, w1_t, b1_c, w2_t, b2_c, w3_t, b3_c, w4_c, b4_c)

    return out[0, :B].reshape(-1, 1)


def init_params(key, resolution=RESOLUTION):
    """Deterministic synthetic parameters (PyTorch-style uniform fan-in bound)."""
    params = []
    for fan_in, fan_out in LAYER_DIMS:
        key, kw, kb = jax.random.split(key, 3)
        bound = 1.0 / float(fan_in * resolution) ** 0.5
        w = jax.random.uniform(kw, (fan_in, resolution, fan_out),
                               jnp.float32, minval=-bound, maxval=bound)
        b = jax.random.uniform(kb, (1, fan_out),
                               jnp.float32, minval=-bound, maxval=bound)
        params += [w, b]
    return params


def _reference_forward(x, params):
    """Pure-JAX reference of the same semantics (for a sanity check)."""
    w1, b1, w2, b2, w3, b3, w4, b4 = params
    x = jnp.asarray(x, jnp.float32).reshape(-1, 1)
    h = jax.nn.sigmoid(x @ w1.sum(1) + b1)
    h = jax.nn.sigmoid(h @ w2.sum(1) + b2)
    h = jax.nn.sigmoid(h @ w3.sum(1) + b3)
    return (h @ w4.sum(1) + b4).reshape(-1, 1)


if __name__ == "__main__":
    key = jax.random.PRNGKey(0)
    key, kx1, kx2 = jax.random.split(key, 3)

    params = init_params(jax.random.PRNGKey(42))
    prepared = prepare_params(params)

    # Small-batch check (single grid step).
    batch = 8
    x = jax.random.normal(kx1, (batch, 1), dtype=jnp.float32)
    out = jax.block_until_ready(dend_fcnet_forward(x, prepared))
    ref = _reference_forward(x, params)
    assert out.shape == (batch, 1)
    assert jnp.allclose(out, ref, atol=1e-4, rtol=1e-4)

    # Multi-tile check: exercises the batch grid (3 tiles of 128 lanes) + padding.
    batch2 = 300
    x2 = jax.random.normal(kx2, (batch2, 1), dtype=jnp.float32)
    out2 = jax.block_until_ready(dend_fcnet_forward(x2, prepared, block_b=128))
    ref2 = _reference_forward(x2, params)
    assert out2.shape == (batch2, 1)
    assert jnp.allclose(out2, ref2, atol=1e-4, rtol=1e-4)

    print("KERNEL_OK")
</pallas_src>

<mosaic_0001>
module attributes {stable_mosaic.version = 11 : i64} {
  func.func @_dend_fcnet_kernel(%arg0: i32, %arg1: memref<1x128xf32, #tpu.memory_space<vmem>>, %arg2: memref<20x1xf32, #tpu.memory_space<vmem>>, %arg3: memref<20x1xf32, #tpu.memory_space<vmem>>, %arg4: memref<40x20xf32, #tpu.memory_space<vmem>>, %arg5: memref<40x1xf32, #tpu.memory_space<vmem>>, %arg6: memref<20x40xf32, #tpu.memory_space<vmem>>, %arg7: memref<20x1xf32, #tpu.memory_space<vmem>>, %arg8: memref<20x1xf32, #tpu.memory_space<vmem>>, %arg9: memref<1x1xf32, #tpu.memory_space<vmem>>, %arg10: memref<1x128xf32, #tpu.memory_space<vmem>>) attributes {dimension_semantics = [#tpu.dimension_semantics<parallel>], iteration_bounds = array<i64: 1>, scalar_prefetch = 0 : i64, scratch_operands = 0 : i64, tpu.core_type = #tpu.core_type<tc>, window_params = [{transform_indices = @transform_0, window_bounds = array<i64: 1, 128>}, {pipeline_mode = #tpu.pipeline_mode<synchronous>, transform_indices = @transform_1, window_bounds = array<i64: 20, 1>}, {pipeline_mode = #tpu.pipeline_mode<synchronous>, transform_indices = @transform_2, window_bounds = array<i64: 20, 1>}, {pipeline_mode = #tpu.pipeline_mode<synchronous>, transform_indices = @transform_3, window_bounds = array<i64: 40, 20>}, {pipeline_mode = #tpu.pipeline_mode<synchronous>, transform_indices = @transform_4, window_bounds = array<i64: 40, 1>}, {pipeline_mode = #tpu.pipeline_mode<synchronous>, transform_indices = @transform_5, window_bounds = array<i64: 20, 40>}, {pipeline_mode = #tpu.pipeline_mode<synchronous>, transform_indices = @transform_6, window_bounds = array<i64: 20, 1>}, {pipeline_mode = #tpu.pipeline_mode<synchronous>, transform_indices = @transform_7, window_bounds = array<i64: 20, 1>}, {pipeline_mode = #tpu.pipeline_mode<synchronous>, transform_indices = @transform_8, window_bounds = array<i64: 1, 1>}, {transform_indices = @transform_9, window_bounds = array<i64: 1, 128>}]} {
    %c0 = arith.constant 0 : index
    %c0_0 = arith.constant 0 : index
    %0 = vector.load %arg1[%c0, %c0_0] : memref<1x128xf32, #tpu.memory_space<vmem>>, vector<1x128xf32>
    %c0_1 = arith.constant 0 : index
    %c0_2 = arith.constant 0 : index
    %1 = vector.load %arg2[%c0_1, %c0_2] : memref<20x1xf32, #tpu.memory_space<vmem>>, vector<20x1xf32>
    %2 = vector.broadcast %1 : vector<20x1xf32> to vector<20x128xf32>
    %3 = vector.broadcast %0 : vector<1x128xf32> to vector<20x128xf32>
    %4 = arith.mulf %2, %3 : vector<20x128xf32>
    %c0_3 = arith.constant 0 : index
    %c0_4 = arith.constant 0 : index
    %5 = vector.load %arg3[%c0_3, %c0_4] : memref<20x1xf32, #tpu.memory_space<vmem>>, vector<20x1xf32>
    %6 = vector.broadcast %5 : vector<20x1xf32> to vector<20x128xf32>
    %7 = arith.addf %4, %6 : vector<20x128xf32>
    %8 = arith.negf %7 : vector<20x128xf32>
    %9 = math.exp %8 : vector<20x128xf32>
    %cst = arith.constant 1.000000e+00 : f32
    %10 = vector.broadcast %cst : f32 to vector<20x128xf32>
    %11 = arith.addf %10, %9 : vector<20x128xf32>
    %12 = arith.divf %10, %11 : vector<20x128xf32>
    %c0_5 = arith.constant 0 : index
    %c0_6 = arith.constant 0 : index
    %13 = vector.load %arg4[%c0_5, %c0_6] : memref<40x20xf32, #tpu.memory_space<vmem>>, vector<40x20xf32>
    %cst_7 = arith.constant dense<0.000000e+00> : vector<40x128xf32>
    %14 = tpu.matmul %13, %12, %cst_7 {dimension_numbers = #tpu.dot_dimension_numbers<[1], [0], [0], [1], [0, 0, 1, 1], [], []>} : vector<40x20xf32>, vector<20x128xf32>, vector<40x128xf32> -> vector<40x128xf32>
    %c0_8 = arith.constant 0 : index
    %c0_9 = arith.constant 0 : index
    %15 = vector.load %arg5[%c0_8, %c0_9] : memref<40x1xf32, #tpu.memory_space<vmem>>, vector<40x1xf32>
    %16 = vector.broadcast %15 : vector<40x1xf32> to vector<40x128xf32>
    %17 = arith.addf %14, %16 : vector<40x128xf32>
    %18 = arith.negf %17 : vector<40x128xf32>
    %19 = math.exp %18 : vector<40x128xf32>
    %cst_10 = arith.constant 1.000000e+00 : f32
    %20 = vector.broadcast %cst_10 : f32 to vector<40x128xf32>
    %21 = arith.addf %20, %19 : vector<40x128xf32>
    %22 = arith.divf %20, %21 : vector<40x128xf32>
    %c0_11 = arith.constant 0 : index
    %c0_12 = arith.constant 0 : index
    %23 = vector.load %arg6[%c0_11, %c0_12] : memref<20x40xf32, #tpu.memory_space<vmem>>, vector<20x40xf32>
    %cst_13 = arith.constant dense<0.000000e+00> : vector<20x128xf32>
    %24 = tpu.matmul %23, %22, %cst_13 {dimension_numbers = #tpu.dot_dimension_numbers<[1], [0], [0], [1], [0, 0, 1, 1], [], []>} : vector<20x40xf32>, vector<40x128xf32>, vector<20x128xf32> -> vector<20x128xf32>
    %c0_14 = arith.constant 0 : index
    %c0_15 = arith.constant 0 : index
    %25 = vector.load %arg7[%c0_14, %c0_15] : memref<20x1xf32, #tpu.memory_space<vmem>>, vector<20x1xf32>
    %26 = vector.broadcast %25 : vector<20x1xf32> to vector<20x128xf32>
    %27 = arith.addf %24, %26 : vector<20x128xf32>
    %28 = arith.negf %27 : vector<20x128xf32>
    %29 = math.exp %28 : vector<20x128xf32>
    %cst_16 = arith.constant 1.000000e+00 : f32
    %30 = vector.broadcast %cst_16 : f32 to vector<20x128xf32>
    %31 = arith.addf %30, %29 : vector<20x128xf32>
    %32 = arith.divf %30, %31 : vector<20x128xf32>
    %c0_17 = arith.constant 0 : index
    %c0_18 = arith.constant 0 : index
    %33 = vector.load %arg8[%c0_17, %c0_18] : memref<20x1xf32, #tpu.memory_space<vmem>>, vector<20x1xf32>
    %34 = vector.broadcast %33 : vector<20x1xf32> to vector<20x128xf32>
    %35 = arith.mulf %34, %32 : vector<20x128xf32>
    %cst_19 = arith.constant dense<0.000000e+00> : vector<128xf32>
    %36 = vector.multi_reduction <add>, %35, %cst_19 [0] : vector<20x128xf32> to vector<128xf32>
    %37 = vector.shape_cast %36 : vector<128xf32> to vector<1x128xf32>
    %c0_20 = arith.constant 0 : index
    %c0_21 = arith.constant 0 : index
    %38 = vector.load %arg9[%c0_20, %c0_21] : memref<1x1xf32, #tpu.memory_space<vmem>>, vector<1x1xf32>
    %39 = vector.broadcast %38 : vector<1x1xf32> to vector<1x128xf32>
    %40 = arith.addf %37, %39 : vector<1x128xf32>
    %c0_22 = arith.constant 0 : index
    %c0_23 = arith.constant 0 : index
    %41 = vector.load %arg10[%c0_22, %c0_23] : memref<1x128xf32, #tpu.memory_space<vmem>>, vector<1x128xf32>
    tpu.vector_store %arg10[%c0_22, %c0_23], %40 {strides = array<i32>} : memref<1x128xf32, #tpu.memory_space<vmem>>, vector<1x128xf32>,
    return
  }
  func.func @transform_0(%arg0: i32) -> (i32, i32) {
    %c0_i32 = arith.constant 0 : i32
    %c0_i32_0 = arith.constant 0 : i32
    return %c0_i32, %arg0 : i32, i32
  }
  func.func @transform_1(%arg0: i32) -> (i32, i32) {
    %c0_i32 = arith.constant 0 : i32
    %c0_i32_0 = arith.constant 0 : i32
    %c0_i32_1 = arith.constant 0 : i32
    return %c0_i32, %c0_i32_0 : i32, i32
  }
  func.func @transform_2(%arg0: i32) -> (i32, i32) {
    %c0_i32 = arith.constant 0 : i32
    %c0_i32_0 = arith.constant 0 : i32
    %c0_i32_1 = arith.constant 0 : i32
    return %c0_i32, %c0_i32_0 : i32, i32
  }
  func.func @transform_3(%arg0: i32) -> (i32, i32) {
    %c0_i32 = arith.constant 0 : i32
    %c0_i32_0 = arith.constant 0 : i32
    %c0_i32_1 = arith.constant 0 : i32
    return %c0_i32, %c0_i32_0 : i32, i32
  }
  func.func @transform_4(%arg0: i32) -> (i32, i32) {
    %c0_i32 = arith.constant 0 : i32
    %c0_i32_0 = arith.constant 0 : i32
    %c0_i32_1 = arith.constant 0 : i32
    return %c0_i32, %c0_i32_0 : i32, i32
  }
  func.func @transform_5(%arg0: i32) -> (i32, i32) {
    %c0_i32 = arith.constant 0 : i32
    %c0_i32_0 = arith.constant 0 : i32
    %c0_i32_1 = arith.constant 0 : i32
    return %c0_i32, %c0_i32_0 : i32, i32
  }
  func.func @transform_6(%arg0: i32) -> (i32, i32) {
    %c0_i32 = arith.constant 0 : i32
    %c0_i32_0 = arith.constant 0 : i32
    %c0_i32_1 = arith.constant 0 : i32
    return %c0_i32, %c0_i32_0 : i32, i32
  }
  func.func @transform_7(%arg0: i32) -> (i32, i32) {
    %c0_i32 = arith.constant 0 : i32
    %c0_i32_0 = arith.constant 0 : i32
    %c0_i32_1 = arith.constant 0 : i32
    return %c0_i32, %c0_i32_0 : i32, i32
  }
  func.func @transform_8(%arg0: i32) -> (i32, i32) {
    %c0_i32 = arith.constant 0 : i32
    %c0_i32_0 = arith.constant 0 : i32
    %c0_i32_1 = arith.constant 0 : i32
    return %c0_i32, %c0_i32_0 : i32, i32
  }
  func.func @transform_9(%arg0: i32) -> (i32, i32) {
    %c0_i32 = arith.constant 0 : i32
    %c0_i32_0 = arith.constant 0 : i32
    return %c0_i32, %arg0 : i32, i32
  }
}

</mosaic_0001>

<llo_original>
// kernel: tpu_custom_call.1
$region0: #{tpu_custom_call.1}
  #allocation0 [shape = 'u32[]', space=smem, size = 0x4, offset = 0x4, fixed_abs, tag = 'smem constant byte address 0x4 - core index']
  #allocation1 [shape = 'u32[144,128]{1,0:T(1,128)}', space=vmem, size = 0x12000, scoped, tag = 'internal scratch']
  #allocation2 [shape = 'f32[1,1]{1,0:T(1,128)S(1)}', space=vmem, size = 0x200, scoped, tag = 'scoped memory for tpu_custom_call.1']
  %s0 = inlined_call_operand.vmem [shape: f32[1,128], index: 0, kind: input, shape index: {}]
  %s1 = inlined_call_operand.vmem [shape: f32[20,1], index: 1, kind: input, shape index: {}]
  %s2 = inlined_call_operand.vmem [shape: f32[20,1], index: 2, kind: input, shape index: {}]
  %s3 = inlined_call_operand.vmem [shape: f32[40,20], index: 3, kind: input, shape index: {}]
  %s4 = inlined_call_operand.vmem [shape: f32[40,1], index: 4, kind: input, shape index: {}]
  %s5 = inlined_call_operand.vmem [shape: f32[20,40], index: 5, kind: input, shape index: {}]
  %s6 = inlined_call_operand.vmem [shape: f32[20,1], index: 6, kind: input, shape index: {}]
  %s7 = inlined_call_operand.vmem [shape: f32[20,1], index: 7, kind: input, shape index: {}]
  %s8 = inlined_call_operand.<no memory space> [shape: f32[1,1], index: 8, kind: input, shape index: {}]
  %s9 = inlined_call_operand.hbm [shape: f32[1,128], index: 9, kind: output, shape index: {}]
  %s10 = sld [smem:[#allocation0]]
  $region46: #{tpu_custom_call.1} parent=0
    _
  %s12 = ssub.s32 1, %s10
  %s13 = scalar_select 0, %s12, %s10
  %v14 = vstv %s8
  %15 = vst [vmem:[#allocation2] sm:$0x1] %v14
  $region1: #{tpu_custom_call.1} parent=0
    #allocation3 [shape = 'u8[512]{0}', space=vmem, size = 0x400, scoped, tag = 'output window, operand 0, single buffered']
    #allocation4 [shape = 's32[1]{0}', space=sflag, size = 0x4, scoped, tag = 'scoped memory for tpu_custom_call.1']
    %16 = vsyncpa [#allocation4], 0
    // Predicated region
    $region2: #{tpu_custom_call.1} parent=1 // pred_check
      _
    $region3: #{tpu_custom_call.1} parent=1 // pred_check_branch
      %18 = sbr.rel (0) target = $region5
    $region4: #{tpu_custom_call.1} parent=1 // pred_region
      _
    $region5: #{tpu_custom_call.1} parent=1 // pred_fallthru
      _
    // Predicated region
    $region6: #{tpu_custom_call.1} parent=1 // pred_check
      _
    $region7: #{tpu_custom_call.1} parent=1 // pred_check_branch
      %20 = sbr.rel (0) target = $region9
    $region8: #{tpu_custom_call.1} parent=1 // pred_region
      _
    $region9: #{tpu_custom_call.1} parent=1 // pred_fallthru
      _
    // Predicated region
    $region10: #{tpu_custom_call.1} parent=1 // pred_check
      _
    $region11: #{tpu_custom_call.1} parent=1 // pred_check_branch
      %22 = sbr.rel (0) target = $region13
    $region12: #{tpu_custom_call.1} parent=1 // pred_region
      _
    $region13: #{tpu_custom_call.1} parent=1 // pred_fallthru
      _
    // Predicated region
    $region14: #{tpu_custom_call.1} parent=1 // pred_check
      _
    $region15: #{tpu_custom_call.1} parent=1 // pred_check_branch
      %24 = sbr.rel (0) target = $region17
    $region16: #{tpu_custom_call.1} parent=1 // pred_region
      _
    $region17: #{tpu_custom_call.1} parent=1 // pred_fallthru
      _
    // Predicated region
    $region18: #{tpu_custom_call.1} parent=1 // pred_check
      _
    $region19: #{tpu_custom_call.1} parent=1 // pred_check_branch
      %26 = sbr.rel (0) target = $region21
    $region20: #{tpu_custom_call.1} parent=1 // pred_region
      _
    $region21: #{tpu_custom_call.1} parent=1 // pred_fallthru
      _
    // Predicated region
    $region22: #{tpu_custom_call.1} parent=1 // pred_check
      _
    $region23: #{tpu_custom_call.1} parent=1 // pred_check_branch
      %28 = sbr.rel (0) target = $region25
    $region24: #{tpu_custom_call.1} parent=1 // pred_region
      _
    $region25: #{tpu_custom_call.1} parent=1 // pred_fallthru
      _
    // Predicated region
    $region26: #{tpu_custom_call.1} parent=1 // pred_check
      _
    $region27: #{tpu_custom_call.1} parent=1 // pred_check_branch
      %30 = sbr.rel (0) target = $region29
    $region28: #{tpu_custom_call.1} parent=1 // pred_region
      _
    $region29: #{tpu_custom_call.1} parent=1 // pred_fallthru
      _
    // Predicated region
    $region30: #{tpu_custom_call.1} parent=1 // pred_check
      _
    $region31: #{tpu_custom_call.1} parent=1 // pred_check_branch
      %32 = sbr.rel (0) target = $region33
    $region32: #{tpu_custom_call.1} parent=1 // pred_region
      _
    $region33: #{tpu_custom_call.1} parent=1 // pred_fallthru
      _
    // Predicated region
    $region34: #{tpu_custom_call.1} parent=1 // pred_check
      _
    $region35: #{tpu_custom_call.1} parent=1 // pred_check_branch
      %34 = sbr.rel (0) target = $region37
    $region36: #{tpu_custom_call.1} parent=1 // pred_region
      _
    $region37: #{tpu_custom_call.1} parent=1 // pred_fallthru
      _
    %v35 = vld [vmem:[%s0] sm:$0x1]
    %v36 = vld [vmem:[%s1] sm:$0xff]
    %v37 = vld [vmem:[%s1 + $0x8] sm:$0xff]
    %v38 = vld [vmem:[%s1 + $0x10] sm:$0xf]
    %40 = vset.pattern.permute.xlu0 0
    %41 = vperm.xlu0 %40, %v36
    %v42 = vpop.permute.xlu0 %41
    %45 = vset.pattern.permute.xlu0 0
    %46 = vperm.xlu0 %45, %v37
    %v47 = vpop.permute.xlu0 %46
    %50 = vset.pattern.permute.xlu0 0
    %51 = vperm.xlu0 %50, %v38
    %v52 = vpop.permute.xlu0 %51
    %v55 = vlaneseq
    %v56 = vshrl.u32 %v55, 7
    %v57 = vsub.s32 0, %v56
    %v58 = vrot.slane %v35, %v57
    %v60 = vmul.f32 %v42, %v58
    %v61 = vmul.f32 %v47, %v58
    %v62 = vmul.f32 %v52, %v58
    %v63 = vld [vmem:[%s2] sm:$0xff]
    %v64 = vld [vmem:[%s2 + $0x8] sm:$0xff]
    %v65 = vld [vmem:[%s2 + $0x10] sm:$0xf]
    %67 = vset.pattern.permute.xlu0 0
    %68 = vperm.xlu0 %67, %v63
    %v69 = vpop.permute.xlu0 %68
    %72 = vset.pattern.permute.xlu0 0
    %73 = vperm.xlu0 %72, %v64
    %v74 = vpop.permute.xlu0 %73
    %77 = vset.pattern.permute.xlu0 0
    %78 = vperm.xlu0 %77, %v65
    %v79 = vpop.permute.xlu0 %78
    %v81 = vadd.f32 %v60, %v69
    %v82 = vadd.f32 %v61, %v74
    %v83 = vadd.f32 %v62, %v79
    %v84 = vxor.u32 %v81, 2147483648
    %v85 = vxor.u32 %v82, 2147483648
    %v86 = vxor.u32 %v83, 2147483648
    %v87 = vmul.f32 %v84, 1.442695
    %v88 = vpow.pop %v87
    %v89 = vmul.f32 %v85, 1.442695
    %v90 = vpow.pop %v89
    %v91 = vmul.f32 %v86, 1.442695
    %v92 = vpow.pop %v91
    %v93 = vadd.f32 %v88, 1.0
    %v94 = vadd.f32 %v90, 1.0
    %v95 = vadd.f32 %v92, 1.0
    %v96 = vrcp.pop %v93
    %v97 = vmul.f32 1.0, %v96
    %v98 = vrcp.pop %v94
    %v99 = vmul.f32 1.0, %v98
    %v100 = vrcp.pop %v95
    %v101 = vmul.f32 1.0, %v100
    %v102 = vld [vmem:[%s3] sm:$0xff]
    %v103 = vld [vmem:[%s3 + $0x8] sm:$0xff]
    %v104 = vld [vmem:[%s3 + $0x10] sm:$0xff]
    %v105 = vld [vmem:[%s3 + $0x18] sm:$0xff]
    %v106 = vld [vmem:[%s3 + $0x20] sm:$0xff]
    %v107 = vld [vmem:[%s4] sm:$0xff]
    %v108 = vld [vmem:[%s4 + $0x8] sm:$0xff]
    %v109 = vld [vmem:[%s4 + $0x10] sm:$0xff]
    %v110 = vld [vmem:[%s4 + $0x18] sm:$0xff]
    %v111 = vld [vmem:[%s4 + $0x20] sm:$0xff]
    %113 = vset.pattern.permute.xlu0 0
    %114 = vperm.xlu0 %113, %v107
    %v115 = vpop.permute.xlu0 %114
    %118 = vset.pattern.permute.xlu0 0
    %119 = vperm.xlu0 %118, %v108
    %v120 = vpop.permute.xlu0 %119
    %123 = vset.pattern.permute.xlu0 0
    %124 = vperm.xlu0 %123, %v109
    %v125 = vpop.permute.xlu0 %124
    %128 = vset.pattern.permute.xlu0 0
    %129 = vperm.xlu0 %128, %v110
    %v130 = vpop.permute.xlu0 %129
    %133 = vset.pattern.permute.xlu0 0
    %134 = vperm.xlu0 %133, %v111
    %v135 = vpop.permute.xlu0 %134
    %vm137 = vcmask 162816
    %v139 = vsel %vm137, %v102, 0
    %v142 = vsel %vm137, %v103, 0
    %v145 = vsel %vm137, %v104, 0
    %v148 = vsel %vm137, %v105, 0
    %v151 = vsel %vm137, %v106, 0
    %vm153 = vcmask 1043456
    %v155 = vsel %vm153, %v101, 0
    %157 = vmatprep.subr.mxu0 0.0
    %158 = vmatpush1.msra.mxu0 %v97
    %159 = vmatprep.subr.mxu0 0.0
    %160 = vmatpush1.msra.mxu0 %v99
    %161 = vmatprep.subr.mxu0 0.0
    %162 = vmatpush1.msra.mxu0 %v155
    %163 = vmatprep.subr.mxu0 0.0
    %164 = vmatpush1.msra.mxu0 0.0
    %165 = vmatprep.subr.mxu0 0.0
    %166 = vmatpush1.msra.mxu0 0.0
    %167 = vmatprep.subr.mxu0 0.0
    %168 = vmatpush1.msra.mxu0 0.0
    %169 = vmatprep.subr.mxu0 0.0
    %170 = vmatpush1.msra.mxu0 0.0
    %171 = vmatprep.subr.mxu0 0.0
    %172 = vmatpush1.msra.mxu0 0.0
    %173 = vmatprep.subr.mxu0 0.0
    %174 = vmatpush1.msra.mxu0 0.0
    %175 = vmatprep.subr.mxu0 0.0
    %176 = vmatpush1.msra.mxu0 0.0
    %177 = vmatprep.subr.mxu0 0.0
    %178 = vmatpush1.msra.mxu0 0.0
    %179 = vmatprep.subr.mxu0 0.0
    %180 = vmatpush1.msra.mxu0 0.0
    %181 = vmatprep.subr.mxu0 0.0
    %182 = vmatpush1.msra.mxu0 0.0
    %183 = vmatprep.subr.mxu0 0.0
    %184 = vmatpush1.msra.mxu0 0.0
    %185 = vmatprep.subr.mxu0 0.0
    %186 = vmatpush1.msra.mxu0 0.0
    %187 = vmatprep.subr.mxu0 0.0
    %188 = vmatpush1.msra.mxu0 0.0
    %189 = vmatprep.subr.mxu0 0.0
    %190 = vmatpush1.msra.mxu0 0.0
    %191 = vmatprep.subr.mxu0 0.0
    %192 = vmatpush1.msra.mxu0 0.0
    %193 = vmatprep.subr.mxu0 0.0
    %194 = vmatpush1.msra.mxu0 0.0
    %195 = vmatprep.subr.mxu0 0.0
    %196 = vmatpush1.msra.mxu0 0.0
    %197 = vmatprep.subr.mxu0 0.0
    %198 = vmatpush1.msra.mxu0 0.0
    %199 = vmatprep.subr.mxu0 0.0
    %200 = vmatpush1.msra.mxu0 0.0
    %201 = vmatprep.subr.mxu0 0.0
    %202 = vmatpush1.msra.mxu0 0.0
    %203 = vmatprep.subr.mxu0 0.0
    %204 = vmatpush1.msra.mxu0 0.0
    %205 = vmatprep.subr.mxu0 0.0
    %206 = vmatpush1.msra.mxu0 0.0
    %207 = vmatprep.subr.mxu0 0.0
    %208 = vmatpush1.msra.mxu0 0.0
    %209 = vmatprep.subr.mxu0 0.0
    %210 = vmatpush1.msra.mxu0 0.0
    %211 = vmatprep.subr.mxu0 0.0
    %212 = vmatpush1.msra.mxu0 0.0
    %213 = vmatprep.subr.mxu0 0.0
    %214 = vmatpush1.msra.mxu0 0.0
    %215 = vmatprep.subr.mxu0 0.0
    %216 = vmatpush1.msra.mxu0 0.0
    %217 = vmatprep.subr.mxu0 0.0
    %218 = vmatpush1.msra.mxu0 0.0
    %219 = vmatprep.subr.mxu0 0.0
    %220 = vmatpush1.msra.mxu0 0.0
    %221 = vmatprep.mubr.f32.mxu0 0.0
    %222 = vmatmul.mubr.f32.gmra.mrb[0].mxu0 %v139
    %v223 = vpop.f32.mrb[0].mxu0
    %v224 = vadd.f32 %v115, %v223
    %v225 = vpop.f32.mrb[0].mxu0
    %226 = vmatprep.mubr.f32.mxu0 0.0
    %227 = vmatmul.mubr.f32.gmra.mrb[0].mxu0 %v142
    %v228 = vpop.f32.mrb[0].mxu0
    %v229 = vadd.f32 %v120, %v228
    %v230 = vpop.f32.mrb[0].mxu0
    %231 = vmatprep.mubr.f32.mxu0 0.0
    %232 = vmatmul.mubr.f32.gmra.mrb[0].mxu0 %v145
    %v233 = vpop.f32.mrb[0].mxu0
    %v234 = vadd.f32 %v125, %v233
    %v235 = vpop.f32.mrb[0].mxu0
    %236 = vmatprep.mubr.f32.mxu0 0.0
    %237 = vmatmul.mubr.f32.gmra.mrb[0].mxu0 %v148
    %v238 = vpop.f32.mrb[0].mxu0
    %v239 = vadd.f32 %v130, %v238
    %v240 = vpop.f32.mrb[0].mxu0
    %241 = vmatprep.mubr.f32.mxu0 0.0
    %242 = vmatmul.mubr.f32.gmra.mrb[0].mxu0 %v151
    %v243 = vpop.f32.mrb[0].mxu0
    %v244 = vadd.f32 %v135, %v243
    %v245 = vpop.f32.mrb[0].mxu0
    %246 = vdwg.mxu0
    %v247 = vxor.u32 %v224, 2147483648
    %v248 = vxor.u32 %v229, 2147483648
    %v249 = vxor.u32 %v234, 2147483648
    %v250 = vxor.u32 %v239, 2147483648
    %v251 = vxor.u32 %v244, 2147483648
    %v252 = vmul.f32 %v247, 1.442695
    %v253 = vpow.pop %v252
    %v254 = vmul.f32 %v248, 1.442695
    %v255 = vpow.pop %v254
    %v256 = vmul.f32 %v249, 1.442695
    %v257 = vpow.pop %v256
    %v258 = vmul.f32 %v250, 1.442695
    %v259 = vpow.pop %v258
    %v260 = vmul.f32 %v251, 1.442695
    %v261 = vpow.pop %v260
    %v262 = vadd.f32 %v253, 1.0
    %v263 = vadd.f32 %v255, 1.0
    %v264 = vadd.f32 %v257, 1.0
    %v265 = vadd.f32 %v259, 1.0
    %v266 = vadd.f32 %v261, 1.0
    %v267 = vrcp.pop %v262
    %v268 = vmul.f32 1.0, %v267
    %v269 = vrcp.pop %v263
    %v270 = vmul.f32 1.0, %v269
    %v271 = vrcp.pop %v264
    %v272 = vmul.f32 1.0, %v271
    %v273 = vrcp.pop %v265
    %v274 = vmul.f32 1.0, %v273
    %v275 = vrcp.pop %v266
    %v276 = vmul.f32 1.0, %v275
    %v277 = vld [vmem:[%s5] sm:$0xff]
    %v278 = vld [vmem:[%s5 + $0x8] sm:$0xff]
    %v279 = vld [vmem:[%s5 + $0x10] sm:$0xf]
    %v280 = vld [vmem:[%s6] sm:$0xff]
    %v281 = vld [vmem:[%s6 + $0x8] sm:$0xff]
    %v282 = vld [vmem:[%s6 + $0x10] sm:$0xf]
    %284 = vset.pattern.permute.xlu0 0
    %285 = vperm.xlu0 %284, %v280
    %v286 = vpop.permute.xlu0 %285
    %289 = vset.pattern.permute.xlu0 0
    %290 = vperm.xlu0 %289, %v281
    %v291 = vpop.permute.xlu0 %290
    %294 = vset.pattern.permute.xlu0 0
    %295 = vperm.xlu0 %294, %v282
    %v296 = vpop.permute.xlu0 %295
    %vm298 = vcmask 326656
    %v300 = vsel %vm298, %v277, 0
    %v303 = vsel %vm298, %v278, 0
    %v306 = vsel %vm298, %v279, 0
    %308 = vmatprep.subr.mxu0 0.0
    %309 = vmatpush1.msra.mxu0 %v268
    %310 = vmatprep.subr.mxu0 0.0
    %311 = vmatpush1.msra.mxu0 %v270
    %312 = vmatprep.subr.mxu0 0.0
    %313 = vmatpush1.msra.mxu0 %v272
    %314 = vmatprep.subr.mxu0 0.0
    %315 = vmatpush1.msra.mxu0 %v274
    %316 = vmatprep.subr.mxu0 0.0
    %317 = vmatpush1.msra.mxu0 %v276
    %318 = vmatprep.subr.mxu0 0.0
    %319 = vmatpush1.msra.mxu0 0.0
    %320 = vmatprep.subr.mxu0 0.0
    %321 = vmatpush1.msra.mxu0 0.0
    %322 = vmatprep.subr.mxu0 0.0
    %323 = vmatpush1.msra.mxu0 0.0
    %324 = vmatprep.subr.mxu0 0.0
    %325 = vmatpush1.msra.mxu0 0.0
    %326 = vmatprep.subr.mxu0 0.0
    %327 = vmatpush1.msra.mxu0 0.0
    %328 = vmatprep.subr.mxu0 0.0
    %329 = vmatpush1.msra.mxu0 0.0
    %330 = vmatprep.subr.mxu0 0.0
    %331 = vmatpush1.msra.mxu0 0.0
    %332 = vmatprep.subr.mxu0 0.0
    %333 = vmatpush1.msra.mxu0 0.0
    %334 = vmatprep.subr.mxu0 0.0
    %335 = vmatpush1.msra.mxu0 0.0
    %336 = vmatprep.subr.mxu0 0.0
    %337 = vmatpush1.msra.mxu0 0.0
    %338 = vmatprep.subr.mxu0 0.0
    %339 = vmatpush1.msra.mxu0 0.0
    %340 = vmatprep.subr.mxu0 0.0
    %341 = vmatpush1.msra.mxu0 0.0
    %342 = vmatprep.subr.mxu0 0.0
    %343 = vmatpush1.msra.mxu0 0.0
    %344 = vmatprep.subr.mxu0 0.0
    %345 = vmatpush1.msra.mxu0 0.0
    %346 = vmatprep.subr.mxu0 0.0
    %347 = vmatpush1.msra.mxu0 0.0
    %348 = vmatprep.subr.mxu0 0.0
    %349 = vmatpush1.msra.mxu0 0.0
    %350 = vmatprep.subr.mxu0 0.0
    %351 = vmatpush1.msra.mxu0 0.0
    %352 = vmatprep.subr.mxu0 0.0
    %353 = vmatpush1.msra.mxu0 0.0
    %354 = vmatprep.subr.mxu0 0.0
    %355 = vmatpush1.msra.mxu0 0.0
    %356 = vmatprep.subr.mxu0 0.0
    %357 = vmatpush1.msra.mxu0 0.0
    %358 = vmatprep.subr.mxu0 0.0
    %359 = vmatpush1.msra.mxu0 0.0
    %360 = vmatprep.subr.mxu0 0.0
    %361 = vmatpush1.msra.mxu0 0.0
    %362 = vmatprep.subr.mxu0 0.0
    %363 = vmatpush1.msra.mxu0 0.0
    %364 = vmatprep.subr.mxu0 0.0
    %365 = vmatpush1.msra.mxu0 0.0
    %366 = vmatprep.subr.mxu0 0.0
    %367 = vmatpush1.msra.mxu0 0.0
    %368 = vmatprep.subr.mxu0 0.0
    %369 = vmatpush1.msra.mxu0 0.0
    %370 = vmatprep.subr.mxu0 0.0
    %371 = vmatpush1.msra.mxu0 0.0
    %372 = vmatprep.mubr.f32.mxu0 0.0
    %373 = vmatmul.mubr.f32.gmra.mrb[0].mxu0 %v300
    %v374 = vpop.f32.mrb[0].mxu0
    %v375 = vadd.f32 %v286, %v374
    %v376 = vpop.f32.mrb[0].mxu0
    %377 = vmatprep.mubr.f32.mxu0 0.0
    %378 = vmatmul.mubr.f32.gmra.mrb[0].mxu0 %v303
    %v379 = vpop.f32.mrb[0].mxu0
    %v380 = vadd.f32 %v291, %v379
    %v381 = vpop.f32.mrb[0].mxu0
    %382 = vmatprep.mubr.f32.mxu0 0.0
    %383 = vmatmul.mubr.f32.gmra.mrb[0].mxu0 %v306
    %v384 = vpop.f32.mrb[0].mxu0
    %v385 = vadd.f32 %v296, %v384
    %v386 = vpop.f32.mrb[0].mxu0
    %387 = vdwg.mxu0
    %v388 = vxor.u32 %v375, 2147483648
    %v389 = vxor.u32 %v380, 2147483648
    %v390 = vxor.u32 %v385, 2147483648
    %v391 = vmul.f32 %v388, 1.442695
    %v392 = vpow.pop %v391
    %v393 = vmul.f32 %v389, 1.442695
    %v394 = vpow.pop %v393
    %v395 = vmul.f32 %v390, 1.442695
    %v396 = vpow.pop %v395
    %v397 = vadd.f32 %v392, 1.0
    %v398 = vadd.f32 %v394, 1.0
    %v399 = vadd.f32 %v396, 1.0
    %v400 = vrcp.pop %v397
    %v401 = vmul.f32 1.0, %v400
    %v402 = vrcp.pop %v398
    %v403 = vmul.f32 1.0, %v402
    %v404 = vrcp.pop %v399
    %v405 = vmul.f32 1.0, %v404
    %v406 = vld [vmem:[%s7] sm:$0xff]
    %v407 = vld [vmem:[%s7 + $0x8] sm:$0xff]
    %v408 = vld [vmem:[%s7 + $0x10] sm:$0xf]
    %410 = vset.pattern.permute.xlu0 0
    %411 = vperm.xlu0 %410, %v406
    %v412 = vpop.permute.xlu0 %411
    %415 = vset.pattern.permute.xlu0 0
    %416 = vperm.xlu0 %415, %v407
    %v417 = vpop.permute.xlu0 %416
    %420 = vset.pattern.permute.xlu0 0
    %421 = vperm.xlu0 %420, %v408
    %v422 = vpop.permute.xlu0 %421
    %v424 = vmul.f32 %v412, %v401
    %v425 = vmul.f32 %v417, %v403
    %v426 = vmul.f32 %v422, %v405
    %v427 = vadd.f32 %v424, %v425
    %v428 = vsel %vm153, %v426, 0.0
    %v429 = vadd.f32 %v427, %v428
    %v430 = vrot.slane %v429, 4
    %v431 = vadd.f32 %v429, %v430
    %v432 = vrot.slane %v431, 2
    %v433 = vadd.f32 %v431, %v432
    %v434 = vrot.slane %v433, 1
    %v435 = vadd.f32 %v433, %v434
    %v436 = vld [vmem:[#allocation2] sm:$0x1]
    %438 = vset.pattern.permute.xlu0 0
    %439 = vperm.xlu0 %438, %v436
    %v440 = vpop.permute.xlu0 %439
    %v442 = vlaneseq
    %v443 = vshrl.u32 %v442, 7
    %v444 = vsub.s32 0, %v443
    %v445 = vrot.slane %v440, %v444
    %v446 = vadd.f32 %v435, %v445
    %447 = vst [vmem:[#allocation3] sm:$0x1] %v446
    // Predicated region
    $region38: #{tpu_custom_call.1} parent=1 // pred_check
      _
    $region39: #{tpu_custom_call.1} parent=1 // pred_check_branch
      %449 = sbr.rel (0) target = $region41
    $region40: #{tpu_custom_call.1} parent=1 // pred_region
      %s451 = ssub.s32 16, 16
      %452 = vsyncadd [#allocation4], %s451
      %s454 = sshll.u32 [#allocation3], 4
      %s455 = int_to_ptr.vmem [resolvable:$true] %s454
      %457 = dma.vmem_to_hbm [thread:$0]  %s455, 16, %s9, [#allocation4]
    $region41: #{tpu_custom_call.1} parent=1 // pred_fallthru
      _
    // Predicated region
    $region42: #{tpu_custom_call.1} parent=1 // pred_check
      _
    $region43: #{tpu_custom_call.1} parent=1 // pred_check_branch
      %459 = sbr.rel (0) target = $region45
    $region44: #{tpu_custom_call.1} parent=1 // pred_region
      %460 = dma.done [#allocation4], 16
    $region45: #{tpu_custom_call.1} parent=1 // pred_fallthru
      _
    %461 = vsyncpa [#allocation4], 1

</llo_original>
